<compile_context>
chip_gen: v7x
topology: tpu7x:2x2x1
jax: 0.10.0
libtpu: 0.0.40
codegen_flags: <defaults>
</compile_context>

<pallas_src>
import functools
import math

import jax
import jax.numpy as jnp
from jax.experimental import pallas as pl
from jax.experimental.pallas import tpu as pltpu


def _make_rnn_kernel(n_gram: int):
    """Bidirectional tanh-RNN over the n_gram axis for one row tile."""

    def kernel(x_ref, pos_ref, wcat_ref, uf_ref, ub_ref, bf_ref, bb_ref, out_ref):
        tm, H = out_ref.shape

        pos = pos_ref[...]  # (tm, 1) int32: row position within its sequence

        # Hoisted bias broadcasts (JAX does not CSE broadcast_in_dim).
        bf_full = jnp.broadcast_to(bf_ref[...], (tm, H))
        bb_full = jnp.broadcast_to(bb_ref[...], (tm, H))

        # Hoisted input projection for both directions: one (tm,H)@(H,2H) MXU
        # push; biases folded in so the time loops only do h @ W_hh.
        proj = jnp.dot(x_ref[...], wcat_ref[...],
                       preferred_element_type=jnp.float32)
        p_f = proj[:, :H] + bf_full
        p_b = proj[:, H:] + bb_full

        uf = uf_ref[...]
        ub = ub_ref[...]

        def inp(p, k, bias_full):
            # Projected input for a timestep whose n-gram shift is k: row r
            # wants row r-k of the same sequence (a roll down by k inside the
            # tile, since tiles hold whole sequences); rows with in-sequence
            # position < k read the zero left-padding, i.e. just the bias.
            if k == 0:
                return p
            return jnp.where(pos >= k, jnp.roll(p, k, axis=0), bias_full)

        # Forward direction: t = 0 .. n_gram-1, shift k = n_gram-1-t; h0 = 0.
        h_f = jnp.tanh(inp(p_f, n_gram - 1, bf_full))
        for t in range(1, n_gram):
            h_f = jnp.tanh(
                inp(p_f, n_gram - 1 - t, bf_full)
                + jnp.dot(h_f, uf, preferred_element_type=jnp.float32))

        # Backward direction: t = n_gram-1 .. 0, shift k = 0 .. n_gram-1; h0 = 0.
        h_b = jnp.tanh(inp(p_b, 0, bb_full))
        for k in range(1, n_gram):
            h_b = jnp.tanh(
                inp(p_b, k, bb_full)
                + jnp.dot(h_b, ub, preferred_element_type=jnp.float32))

        # out = sum of the two directions' final hidden states.
        out_ref[...] = (h_f + h_b).astype(out_ref.dtype)

    return kernel


def _choose_tile(batch: int, seq: int, target_rows: int = 2048):
    """Rows per tile (whole sequences, 8-sublane aligned) and grid length."""
    n_rows = batch * seq
    step = 8 // math.gcd(seq, 8)          # seqs/tile needed for 8-row alignment
    m = max(1, target_rows // seq)        # aim for ~target_rows rows per tile
    if batch >= 2:
        m = min(m, (batch + 1) // 2)      # keep grid >= 2 (v7x has 2 TensorCores)
    m = max(step, (m // step) * step)     # round to sublane alignment
    if m >= batch:
        return n_rows, 1                  # single full-array block (always legal)
    return m * seq, -(-batch // m)        # cdiv grid; tail tile is masked


def ngram_lstm_forward(x, params, n_gram, *, target_rows=2048):
    """NgramLSTM.forward.  x: (B, S, H) float32 -> (B, S, H) float32."""
    B, S, H = x.shape
    N = B * S
    x_flat = x.reshape(N, H)              # free reshape; zz is never built

    # Pre-transpose / fold weights so the kernel does plain (rows,H)@(H,*) dots.
    wcat = jnp.concatenate(
        [params["weight_ih_l0"].T, params["weight_ih_l0_reverse"].T], axis=1)   # (H, 2H)
    uf = params["weight_hh_l0"].T                                               # (H, H)
    ub = params["weight_hh_l0_reverse"].T                                       # (H, H)
    b_f = (params["bias_ih_l0"] + params["bias_hh_l0"]).reshape(1, H)
    b_b = (params["bias_ih_l0_reverse"] + params["bias_hh_l0_reverse"]).reshape(1, H)

    tm, grid = _choose_tile(B, S, target_rows)
    # Position of every tile row inside its sequence. Tiles start at sequence
    # boundaries, so this is identical for every grid step (fetched once).
    pos = (jnp.arange(tm, dtype=jnp.int32) % S).reshape(tm, 1)

    kernel = _make_rnn_kernel(n_gram)
    out_flat = pl.pallas_call(
        kernel,
        out_shape=jax.ShapeDtypeStruct((N, H), x.dtype),
        grid_spec=pltpu.PrefetchScalarGridSpec(
            num_scalar_prefetch=0,
            grid=(grid,),
            in_specs=[
                pl.BlockSpec((tm, H), lambda i: (i, 0)),      # x row tile
                pl.BlockSpec((tm, 1), lambda i: (0, 0)),      # row position in seq
                pl.BlockSpec((H, 2 * H), lambda i: (0, 0)),   # [W_ih_f^T | W_ih_b^T]
                pl.BlockSpec((H, H), lambda i: (0, 0)),       # W_hh_f^T
                pl.BlockSpec((H, H), lambda i: (0, 0)),       # W_hh_b^T
                pl.BlockSpec((1, H), lambda i: (0, 0)),       # folded bias fwd
                pl.BlockSpec((1, H), lambda i: (0, 0)),       # folded bias bwd
            ],
            out_specs=pl.BlockSpec((tm, H), lambda i: (i, 0)),
        ),
        compiler_params=pltpu.CompilerParams(
            dimension_semantics=("parallel",),
            vmem_limit_bytes=32 * 1024 * 1024,
        ),
    )(x_flat, pos, wcat, uf, ub, b_f, b_b)

    return out_flat.reshape(B, S, H)


def init_params(key, hidden_size):
    """Deterministic nn.RNN-style init: U(-1/sqrt(H), 1/sqrt(H))."""
    bound = 1.0 / math.sqrt(hidden_size)
    names = [
        "weight_ih_l0", "weight_hh_l0", "bias_ih_l0", "bias_hh_l0",
        "weight_ih_l0_reverse", "weight_hh_l0_reverse",
        "bias_ih_l0_reverse", "bias_hh_l0_reverse",
    ]
    shapes = {
        "weight_ih_l0": (hidden_size, hidden_size),
        "weight_hh_l0": (hidden_size, hidden_size),
        "bias_ih_l0": (hidden_size,),
        "bias_hh_l0": (hidden_size,),
        "weight_ih_l0_reverse": (hidden_size, hidden_size),
        "weight_hh_l0_reverse": (hidden_size, hidden_size),
        "bias_ih_l0_reverse": (hidden_size,),
        "bias_hh_l0_reverse": (hidden_size,),
    }
    params = {}
    keys = jax.random.split(key, len(names))
    for k, name in zip(keys, names):
        params[name] = jax.random.uniform(
            k, shapes[name], jnp.float32, minval=-bound, maxval=bound
        )
    return params


def _build_zz(x, n_gram):
    """Reference-only helper: the (n_gram, B*S, H) time-major shifted stack."""
    B, S, H = x.shape
    slices = []
    for j in range(n_gram):
        shift = n_gram - 1 - j
        if shift == 0:
            xs = x
        else:
            xs = jnp.pad(x, ((0, 0), (shift, 0), (0, 0)))[:, :S, :]
        slices.append(xs)
    return jnp.stack(slices, axis=0).reshape(n_gram, B * S, H)


def _reference_forward(x, params, n_gram):
    """Pure-JAX reference of the PyTorch forward (for correctness check)."""
    B, S, H = x.shape
    zz = _build_zz(x, n_gram)  # (T, N, H)

    def run_dir(seq, w_ih, w_hh, b_ih, b_hh):
        h = jnp.zeros((B * S, H), jnp.float32)
        for t in range(seq.shape[0]):
            h = jnp.tanh(seq[t] @ w_ih.T + b_ih + h @ w_hh.T + b_hh)
        return h

    h_fwd = run_dir(zz, params["weight_ih_l0"], params["weight_hh_l0"],
                    params["bias_ih_l0"], params["bias_hh_l0"])
    h_bwd = run_dir(zz[::-1], params["weight_ih_l0_reverse"],
                    params["weight_hh_l0_reverse"],
                    params["bias_ih_l0_reverse"], params["bias_hh_l0_reverse"])
    return (h_fwd + h_bwd).reshape(B, S, H)


if __name__ == "__main__":
    n_gram = 3
    B, S, H = 2, 8, 32   # input_size == hidden_size == H

    key = jax.random.PRNGKey(0)
    kx, kp, kx2 = jax.random.split(key, 3)
    x = jax.random.normal(kx, (B, S, H), jnp.float32)
    params = init_params(kp, H)

    fwd = jax.jit(functools.partial(ngram_lstm_forward, n_gram=n_gram))
    out = jax.block_until_ready(fwd(x, params))
    ref = _reference_forward(x, params, n_gram)
    assert out.shape == (B, S, H)
    assert jnp.allclose(out, ref, rtol=1e-3, atol=1e-3), "mismatch vs reference"

    # Second config: exercises multi-sequence tiles and a masked partial tail
    # tile (B=3 sequences, 2 sequences per tile, cdiv grid of 2).
    B2, S2 = 3, 8
    x2 = jax.random.normal(kx2, (B2, S2, H), jnp.float32)
    out2 = jax.block_until_ready(
        jax.jit(functools.partial(ngram_lstm_forward, n_gram=n_gram))(x2, params))
    ref2 = _reference_forward(x2, params, n_gram)
    assert out2.shape == (B2, S2, H)
    assert jnp.allclose(out2, ref2, rtol=1e-3, atol=1e-3), "tail-tile mismatch"

    print("KERNEL_OK")
</pallas_src>

<mosaic_0001>
module attributes {stable_mosaic.version = 11 : i64} {
  func.func @kernel(%arg0: i32, %arg1: memref<8x32xf32, #tpu.memory_space<vmem>>, %arg2: memref<8x1xi32, #tpu.memory_space<vmem>>, %arg3: memref<32x64xf32, #tpu.memory_space<vmem>>, %arg4: memref<32x32xf32, #tpu.memory_space<vmem>>, %arg5: memref<32x32xf32, #tpu.memory_space<vmem>>, %arg6: memref<1x32xf32, #tpu.memory_space<vmem>>, %arg7: memref<1x32xf32, #tpu.memory_space<vmem>>, %arg8: memref<8x32xf32, #tpu.memory_space<vmem>>) attributes {dimension_semantics = [#tpu.dimension_semantics<parallel>], iteration_bounds = array<i64: 2>, scalar_prefetch = 0 : i64, scratch_operands = 0 : i64, tpu.core_type = #tpu.core_type<tc>, window_params = [{transform_indices = @transform_0, window_bounds = array<i64: 8, 32>}, {pipeline_mode = #tpu.pipeline_mode<synchronous>, transform_indices = @transform_1, window_bounds = array<i64: 8, 1>}, {pipeline_mode = #tpu.pipeline_mode<synchronous>, transform_indices = @transform_2, window_bounds = array<i64: 32, 64>}, {pipeline_mode = #tpu.pipeline_mode<synchronous>, transform_indices = @transform_3, window_bounds = array<i64: 32, 32>}, {pipeline_mode = #tpu.pipeline_mode<synchronous>, transform_indices = @transform_4, window_bounds = array<i64: 32, 32>}, {pipeline_mode = #tpu.pipeline_mode<synchronous>, transform_indices = @transform_5, window_bounds = array<i64: 1, 32>}, {pipeline_mode = #tpu.pipeline_mode<synchronous>, transform_indices = @transform_6, window_bounds = array<i64: 1, 32>}, {transform_indices = @transform_7, window_bounds = array<i64: 8, 32>}]} {
    %c0 = arith.constant 0 : index
    %c0_0 = arith.constant 0 : index
    %0 = vector.load %arg2[%c0, %c0_0] : memref<8x1xi32, #tpu.memory_space<vmem>>, vector<8x1xi32>
    %c0_1 = arith.constant 0 : index
    %c0_2 = arith.constant 0 : index
    %1 = vector.load %arg6[%c0_1, %c0_2] : memref<1x32xf32, #tpu.memory_space<vmem>>, vector<1x32xf32>
    %2 = vector.shape_cast %1 : vector<1x32xf32> to vector<1x32xf32>
    %3 = vector.broadcast %2 : vector<1x32xf32> to vector<8x32xf32>
    %c0_3 = arith.constant 0 : index
    %c0_4 = arith.constant 0 : index
    %4 = vector.load %arg7[%c0_3, %c0_4] : memref<1x32xf32, #tpu.memory_space<vmem>>, vector<1x32xf32>
    %5 = vector.shape_cast %4 : vector<1x32xf32> to vector<1x32xf32>
    %6 = vector.broadcast %5 : vector<1x32xf32> to vector<8x32xf32>
    %c0_5 = arith.constant 0 : index
    %c0_6 = arith.constant 0 : index
    %7 = vector.load %arg1[%c0_5, %c0_6] : memref<8x32xf32, #tpu.memory_space<vmem>>, vector<8x32xf32>
    %c0_7 = arith.constant 0 : index
    %c0_8 = arith.constant 0 : index
    %8 = vector.load %arg3[%c0_7, %c0_8] : memref<32x64xf32, #tpu.memory_space<vmem>>, vector<32x64xf32>
    %cst = arith.constant dense<0.000000e+00> : vector<8x64xf32>
    %9 = tpu.matmul %7, %8, %cst {dimension_numbers = #tpu.dot_dimension_numbers<[1], [0], [0], [1], [0, 0, 1, 1], [], []>} : vector<8x32xf32>, vector<32x64xf32>, vector<8x64xf32> -> vector<8x64xf32>
    %10 = vector.extract_strided_slice %9 {offsets = [0, 0], sizes = [8, 32], strides = [1, 1]} : vector<8x64xf32> to vector<8x32xf32>
    %11 = arith.addf %10, %3 : vector<8x32xf32>
    %12 = vector.extract_strided_slice %9 {offsets = [0, 32], sizes = [8, 32], strides = [1, 1]} : vector<8x64xf32> to vector<8x32xf32>
    %13 = arith.addf %12, %6 : vector<8x32xf32>
    %c0_9 = arith.constant 0 : index
    %c0_10 = arith.constant 0 : index
    %14 = vector.load %arg4[%c0_9, %c0_10] : memref<32x32xf32, #tpu.memory_space<vmem>>, vector<32x32xf32>
    %c0_11 = arith.constant 0 : index
    %c0_12 = arith.constant 0 : index
    %15 = vector.load %arg5[%c0_11, %c0_12] : memref<32x32xf32, #tpu.memory_space<vmem>>, vector<32x32xf32>
    %c2_i32 = arith.constant 2 : i32
    %16 = vector.broadcast %c2_i32 : i32 to vector<8x1xi32>
    %17 = arith.cmpi sge, %0, %16 : vector<8x1xi32>
    %18 = vector.extract_strided_slice %11 {offsets = [6, 0], sizes = [2, 32], strides = [1, 1]} : vector<8x32xf32> to vector<2x32xf32>
    %19 = vector.extract_strided_slice %11 {offsets = [0, 0], sizes = [6, 32], strides = [1, 1]} : vector<8x32xf32> to vector<6x32xf32>
    %20 = tpu.concatenate %18, %19 in 0 : vector<2x32xf32>, vector<6x32xf32> -> vector<8x32xf32>
    %21 = vector.shape_cast %17 : vector<8x1xi1> to vector<8x1xi1>
    %22 = vector.broadcast %21 : vector<8x1xi1> to vector<8x32xi1>
    %23 = arith.select %22, %20, %3 : vector<8x32xi1>, vector<8x32xf32>
    %24 = math.tanh %23 : vector<8x32xf32>
    %c1_i32 = arith.constant 1 : i32
    %25 = vector.broadcast %c1_i32 : i32 to vector<8x1xi32>
    %26 = arith.cmpi sge, %0, %25 : vector<8x1xi32>
    %27 = vector.extract_strided_slice %11 {offsets = [7, 0], sizes = [1, 32], strides = [1, 1]} : vector<8x32xf32> to vector<1x32xf32>
    %28 = vector.extract_strided_slice %11 {offsets = [0, 0], sizes = [7, 32], strides = [1, 1]} : vector<8x32xf32> to vector<7x32xf32>
    %29 = tpu.concatenate %27, %28 in 0 : vector<1x32xf32>, vector<7x32xf32> -> vector<8x32xf32>
    %30 = vector.shape_cast %26 : vector<8x1xi1> to vector<8x1xi1>
    %31 = vector.broadcast %30 : vector<8x1xi1> to vector<8x32xi1>
    %32 = arith.select %31, %29, %3 : vector<8x32xi1>, vector<8x32xf32>
    %cst_13 = arith.constant dense<0.000000e+00> : vector<8x32xf32>
    %33 = tpu.matmul %24, %14, %cst_13 {dimension_numbers = #tpu.dot_dimension_numbers<[1], [0], [0], [1], [0, 0, 1, 1], [], []>} : vector<8x32xf32>, vector<32x32xf32>, vector<8x32xf32> -> vector<8x32xf32>
    %34 = arith.addf %32, %33 : vector<8x32xf32>
    %35 = math.tanh %34 : vector<8x32xf32>
    %cst_14 = arith.constant dense<0.000000e+00> : vector<8x32xf32>
    %36 = tpu.matmul %35, %14, %cst_14 {dimension_numbers = #tpu.dot_dimension_numbers<[1], [0], [0], [1], [0, 0, 1, 1], [], []>} : vector<8x32xf32>, vector<32x32xf32>, vector<8x32xf32> -> vector<8x32xf32>
    %37 = arith.addf %11, %36 : vector<8x32xf32>
    %38 = math.tanh %37 : vector<8x32xf32>
    %39 = math.tanh %13 : vector<8x32xf32>
    %c1_i32_15 = arith.constant 1 : i32
    %40 = vector.broadcast %c1_i32_15 : i32 to vector<8x1xi32>
    %41 = arith.cmpi sge, %0, %40 : vector<8x1xi32>
    %42 = vector.extract_strided_slice %13 {offsets = [7, 0], sizes = [1, 32], strides = [1, 1]} : vector<8x32xf32> to vector<1x32xf32>
    %43 = vector.extract_strided_slice %13 {offsets = [0, 0], sizes = [7, 32], strides = [1, 1]} : vector<8x32xf32> to vector<7x32xf32>
    %44 = tpu.concatenate %42, %43 in 0 : vector<1x32xf32>, vector<7x32xf32> -> vector<8x32xf32>
    %45 = vector.shape_cast %41 : vector<8x1xi1> to vector<8x1xi1>
    %46 = vector.broadcast %45 : vector<8x1xi1> to vector<8x32xi1>
    %47 = arith.select %46, %44, %6 : vector<8x32xi1>, vector<8x32xf32>
    %cst_16 = arith.constant dense<0.000000e+00> : vector<8x32xf32>
    %48 = tpu.matmul %39, %15, %cst_16 {dimension_numbers = #tpu.dot_dimension_numbers<[1], [0], [0], [1], [0, 0, 1, 1], [], []>} : vector<8x32xf32>, vector<32x32xf32>, vector<8x32xf32> -> vector<8x32xf32>
    %49 = arith.addf %47, %48 : vector<8x32xf32>
    %50 = math.tanh %49 : vector<8x32xf32>
    %c2_i32_17 = arith.constant 2 : i32
    %51 = vector.broadcast %c2_i32_17 : i32 to vector<8x1xi32>
    %52 = arith.cmpi sge, %0, %51 : vector<8x1xi32>
    %53 = vector.extract_strided_slice %13 {offsets = [6, 0], sizes = [2, 32], strides = [1, 1]} : vector<8x32xf32> to vector<2x32xf32>
    %54 = vector.extract_strided_slice %13 {offsets = [0, 0], sizes = [6, 32], strides = [1, 1]} : vector<8x32xf32> to vector<6x32xf32>
    %55 = tpu.concatenate %53, %54 in 0 : vector<2x32xf32>, vector<6x32xf32> -> vector<8x32xf32>
    %56 = vector.shape_cast %52 : vector<8x1xi1> to vector<8x1xi1>
    %57 = vector.broadcast %56 : vector<8x1xi1> to vector<8x32xi1>
    %58 = arith.select %57, %55, %6 : vector<8x32xi1>, vector<8x32xf32>
    %cst_18 = arith.constant dense<0.000000e+00> : vector<8x32xf32>
    %59 = tpu.matmul %50, %15, %cst_18 {dimension_numbers = #tpu.dot_dimension_numbers<[1], [0], [0], [1], [0, 0, 1, 1], [], []>} : vector<8x32xf32>, vector<32x32xf32>, vector<8x32xf32> -> vector<8x32xf32>
    %60 = arith.addf %58, %59 : vector<8x32xf32>
    %61 = math.tanh %60 : vector<8x32xf32>
    %62 = arith.addf %38, %61 : vector<8x32xf32>
    %c0_19 = arith.constant 0 : index
    %c0_20 = arith.constant 0 : index
    %63 = vector.load %arg8[%c0_19, %c0_20] : memref<8x32xf32, #tpu.memory_space<vmem>>, vector<8x32xf32>
    tpu.vector_store %arg8[%c0_19, %c0_20], %62 {strides = array<i32>} : memref<8x32xf32, #tpu.memory_space<vmem>>, vector<8x32xf32>,
    return
  }
  func.func @transform_0(%arg0: i32) -> (i32, i32) {
    %c0_i32 = arith.constant 0 : i32
    %c0_i32_0 = arith.constant 0 : i32
    return %arg0, %c0_i32 : i32, i32
  }
  func.func @transform_1(%arg0: i32) -> (i32, i32) {
    %c0_i32 = arith.constant 0 : i32
    %c0_i32_0 = arith.constant 0 : i32
    %c0_i32_1 = arith.constant 0 : i32
    return %c0_i32, %c0_i32_0 : i32, i32
  }
  func.func @transform_2(%arg0: i32) -> (i32, i32) {
    %c0_i32 = arith.constant 0 : i32
    %c0_i32_0 = arith.constant 0 : i32
    %c0_i32_1 = arith.constant 0 : i32
    return %c0_i32, %c0_i32_0 : i32, i32
  }
  func.func @transform_3(%arg0: i32) -> (i32, i32) {
    %c0_i32 = arith.constant 0 : i32
    %c0_i32_0 = arith.constant 0 : i32
    %c0_i32_1 = arith.constant 0 : i32
    return %c0_i32, %c0_i32_0 : i32, i32
  }
  func.func @transform_4(%arg0: i32) -> (i32, i32) {
    %c0_i32 = arith.constant 0 : i32
    %c0_i32_0 = arith.constant 0 : i32
    %c0_i32_1 = arith.constant 0 : i32
    return %c0_i32, %c0_i32_0 : i32, i32
  }
  func.func @transform_5(%arg0: i32) -> (i32, i32) {
    %c0_i32 = arith.constant 0 : i32
    %c0_i32_0 = arith.constant 0 : i32
    %c0_i32_1 = arith.constant 0 : i32
    return %c0_i32, %c0_i32_0 : i32, i32
  }
  func.func @transform_6(%arg0: i32) -> (i32, i32) {
    %c0_i32 = arith.constant 0 : i32
    %c0_i32_0 = arith.constant 0 : i32
    %c0_i32_1 = arith.constant 0 : i32
    return %c0_i32, %c0_i32_0 : i32, i32
  }
  func.func @transform_7(%arg0: i32) -> (i32, i32) {
    %c0_i32 = arith.constant 0 : i32
    %c0_i32_0 = arith.constant 0 : i32
    return %arg0, %c0_i32 : i32, i32
  }
}

</mosaic_0001>

<llo_original>
// kernel: ngram_lstm_forward.1
$region0: #{ngram_lstm_forward.1}
  #allocation0 [shape = 'u32[]', space=smem, size = 0x4, offset = 0x4, fixed_abs, tag = 'smem constant byte address 0x4 - core index']
  #allocation1 [shape = 'u32[144,128]{1,0:T(1,128)}', space=vmem, size = 0x12000, scoped, tag = 'internal scratch']
  %s0 = inlined_call_operand.vmem [shape: f32[16,32], index: 0, kind: input, shape index: {}]
  %s1 = inlined_call_operand.vmem [shape: s32[8,1], index: 1, kind: input, shape index: {}]
  %s2 = inlined_call_operand.vmem [shape: f32[32,64], index: 2, kind: input, shape index: {}]
  %s3 = inlined_call_operand.vmem [shape: f32[32,32], index: 3, kind: input, shape index: {}]
  %s4 = inlined_call_operand.vmem [shape: f32[32,32], index: 4, kind: input, shape index: {}]
  %s5 = inlined_call_operand.vmem [shape: f32[1,32], index: 5, kind: input, shape index: {}]
  %s6 = inlined_call_operand.vmem [shape: f32[1,32], index: 6, kind: input, shape index: {}]
  %s7 = inlined_call_operand.hbm [shape: f32[16,32], index: 7, kind: output, shape index: {}]
  %s8 = sld [smem:[#allocation0]]
  $region61: #{ngram_lstm_forward.1} parent=0
    _
  %s10 = ssub.s32 1, %s8
  %s11 = scalar_select 0, %s10, %s8
  $region1: #{ngram_lstm_forward.1} parent=0
    #allocation2 [shape = 'u8[8192]{0}', space=vmem, size = 0x2000, scoped, tag = 'output window, operand 0']
    #allocation3 [shape = 's32[2]{0}', space=sflag, size = 0x8, scoped, tag = 'scoped memory for ngram_lstm_forward.1']
    %12 = vsyncpa [#allocation3], 0
    %s13 = scalar_lea.sflag [#allocation3], 1
    %14 = vsyncpa %s13, 0
    loop: start=0, step=1, limit=4
    $region2: #{ngram_lstm_forward.1} parent=1 // loop_pre_header
      _
    $region3: #{ngram_lstm_forward.1} parent=1 // loop_header
      %s16 = sphi 0, %s20
      %p17 = scmp.ge.s32.totalorder %s16, 4
      %s26 = sphi 0, %s28
      %s29 = sphi 0, %s26
      %s30 = sphi 0, %s29
      %s46 = sphi 0, %s30
      %s50 = sphi 0, %s50
      %s52 = sphi 0, %s50
      %s53 = sphi 0, %s52
      %s67 = sphi 0, %s53
      %s71 = sphi 0, %s71
      %s73 = sphi 0, %s71
      %s74 = sphi 0, %s73
      %s88 = sphi 0, %s74
      %s92 = sphi 0, %s92
      %s94 = sphi 0, %s92
      %s95 = sphi 0, %s94
      %s109 = sphi 0, %s95
      %s113 = sphi 0, %s113
      %s115 = sphi 0, %s113
      %s116 = sphi 0, %s115
      %s130 = sphi 0, %s116
      %s134 = sphi 0, %s134
      %s136 = sphi 0, %s134
      %s137 = sphi 0, %s136
      %s151 = sphi 0, %s137
      %s155 = sphi 0, %s155
      %s157 = sphi 0, %s155
      %s158 = sphi 0, %s157
      %s172 = sphi 0, %s158
      %s178 = sphi 0, %s180
      %s181 = sphi 0, %s178
      %s182 = sphi 0, %s181
      %s198 = sphi 0, %s182
    $region4: #{ngram_lstm_forward.1} parent=1 // loop_header_branch
      %19 = sbr.rel (%p17) target = $region8
    $region5: #{ngram_lstm_forward.1} parent=1 // loop_body
      %s21 = ssub.s32 %s16, 1
      %s22 = ssub.s32 %s16, 2
      %s23 = sadd.s32 %s16, 1
      %s24 = ssub.s32 %s16, %s23
      %p25 = scmp.eq.s32.totalorder %s24, 0
      %s27 = sadd.s32 %s26, 1
      %s28 = scalar_select %p25, %s26, %s27
      %p31 = pneg %p25
      %p32 = scmp.eq.s32.totalorder %s16, 1
      %p33 = por %p31, %p32
      %p34 = scmp.ne.s32.totalorder %s26, %s29
      %p35 = scmp.eq.s32.totalorder %s16, 0
      %p36 = por %p34, %p35
      %p37 = scmp.ne.s32.totalorder %s26, %s29
      %p38 = scmp.eq.s32.totalorder %s21, 1
      %p39 = por %p37, %p38
      %p40 = scmp.ne.s32.totalorder %s29, %s30
      %p41 = scmp.eq.s32.totalorder %s21, 0
      %p42 = por %p40, %p41
      %p43 = scmp.ne.s32.totalorder %s29, %s30
      %p44 = scmp.eq.s32.totalorder %s22, 1
      %p45 = por %p43, %p44
      %p47 = scmp.ne.s32.totalorder %s30, %s46
      %p48 = scmp.eq.s32.totalorder %s22, 0
      %p49 = por %p47, %p48
      %s51 = sadd.s32 %s50, 1
      %p54 = scmp.eq.s32.totalorder %s16, 1
      %p55 = scmp.ne.s32.totalorder %s50, %s52
      %p56 = scmp.eq.s32.totalorder %s16, 0
      %p57 = por %p55, %p56
      %p58 = scmp.ne.s32.totalorder %s50, %s52
      %p59 = scmp.eq.s32.totalorder %s21, 1
      %p60 = por %p58, %p59
      %p61 = scmp.ne.s32.totalorder %s52, %s53
      %p62 = scmp.eq.s32.totalorder %s21, 0
      %p63 = por %p61, %p62
      %p64 = scmp.ne.s32.totalorder %s52, %s53
      %p65 = scmp.eq.s32.totalorder %s22, 1
      %p66 = por %p64, %p65
      %p68 = scmp.ne.s32.totalorder %s53, %s67
      %p69 = scmp.eq.s32.totalorder %s22, 0
      %p70 = por %p68, %p69
      %s72 = sadd.s32 %s71, 1
      %p75 = scmp.eq.s32.totalorder %s16, 1
      %p76 = scmp.ne.s32.totalorder %s71, %s73
      %p77 = scmp.eq.s32.totalorder %s16, 0
      %p78 = por %p76, %p77
      %p79 = scmp.ne.s32.totalorder %s71, %s73
      %p80 = scmp.eq.s32.totalorder %s21, 1
      %p81 = por %p79, %p80
      %p82 = scmp.ne.s32.totalorder %s73, %s74
      %p83 = scmp.eq.s32.totalorder %s21, 0
      %p84 = por %p82, %p83
      %p85 = scmp.ne.s32.totalorder %s73, %s74
      %p86 = scmp.eq.s32.totalorder %s22, 1
      %p87 = por %p85, %p86
      %p89 = scmp.ne.s32.totalorder %s74, %s88
      %p90 = scmp.eq.s32.totalorder %s22, 0
      %p91 = por %p89, %p90
      %s93 = sadd.s32 %s92, 1
      %p96 = scmp.eq.s32.totalorder %s16, 1
      %p97 = scmp.ne.s32.totalorder %s92, %s94
      %p98 = scmp.eq.s32.totalorder %s16, 0
      %p99 = por %p97, %p98
      %p100 = scmp.ne.s32.totalorder %s92, %s94
      %p101 = scmp.eq.s32.totalorder %s21, 1
      %p102 = por %p100, %p101
      %p103 = scmp.ne.s32.totalorder %s94, %s95
      %p104 = scmp.eq.s32.totalorder %s21, 0
      %p105 = por %p103, %p104
      %p106 = scmp.ne.s32.totalorder %s94, %s95
      %p107 = scmp.eq.s32.totalorder %s22, 1
      %p108 = por %p106, %p107
      %p110 = scmp.ne.s32.totalorder %s95, %s109
      %p111 = scmp.eq.s32.totalorder %s22, 0
      %p112 = por %p110, %p111
      %s114 = sadd.s32 %s113, 1
      %p117 = scmp.eq.s32.totalorder %s16, 1
      %p118 = scmp.ne.s32.totalorder %s113, %s115
      %p119 = scmp.eq.s32.totalorder %s16, 0
      %p120 = por %p118, %p119
      %p121 = scmp.ne.s32.totalorder %s113, %s115
      %p122 = scmp.eq.s32.totalorder %s21, 1
      %p123 = por %p121, %p122
      %p124 = scmp.ne.s32.totalorder %s115, %s116
      %p125 = scmp.eq.s32.totalorder %s21, 0
      %p126 = por %p124, %p125
      %p127 = scmp.ne.s32.totalorder %s115, %s116
      %p128 = scmp.eq.s32.totalorder %s22, 1
      %p129 = por %p127, %p128
      %p131 = scmp.ne.s32.totalorder %s116, %s130
      %p132 = scmp.eq.s32.totalorder %s22, 0
      %p133 = por %p131, %p132
      %s135 = sadd.s32 %s134, 1
      %p138 = scmp.eq.s32.totalorder %s16, 1
      %p139 = scmp.ne.s32.totalorder %s134, %s136
      %p140 = scmp.eq.s32.totalorder %s16, 0
      %p141 = por %p139, %p140
      %p142 = scmp.ne.s32.totalorder %s134, %s136
      %p143 = scmp.eq.s32.totalorder %s21, 1
      %p144 = por %p142, %p143
      %p145 = scmp.ne.s32.totalorder %s136, %s137
      %p146 = scmp.eq.s32.totalorder %s21, 0
      %p147 = por %p145, %p146
      %p148 = scmp.ne.s32.totalorder %s136, %s137
      %p149 = scmp.eq.s32.totalorder %s22, 1
      %p150 = por %p148, %p149
      %p152 = scmp.ne.s32.totalorder %s137, %s151
      %p153 = scmp.eq.s32.totalorder %s22, 0
      %p154 = por %p152, %p153
      %s156 = sadd.s32 %s155, 1
      %p159 = scmp.eq.s32.totalorder %s16, 1
      %p160 = scmp.ne.s32.totalorder %s155, %s157
      %p161 = scmp.eq.s32.totalorder %s16, 0
      %p162 = por %p160, %p161
      %p163 = scmp.ne.s32.totalorder %s155, %s157
      %p164 = scmp.eq.s32.totalorder %s21, 1
      %p165 = por %p163, %p164
      %p166 = scmp.ne.s32.totalorder %s157, %s158
      %p167 = scmp.eq.s32.totalorder %s21, 0
      %p168 = por %p166, %p167
      %p169 = scmp.ne.s32.totalorder %s157, %s158
      %p170 = scmp.eq.s32.totalorder %s22, 1
      %p171 = por %p169, %p170
      %p173 = scmp.ne.s32.totalorder %s158, %s172
      %p174 = scmp.eq.s32.totalorder %s22, 0
      %p175 = por %p173, %p174
      %s176 = ssub.s32 %s16, %s23
      %p177 = scmp.eq.s32.totalorder %s176, 0
      %s179 = sadd.s32 %s178, 1
      %s180 = scalar_select %p177, %s178, %s179
      %p183 = pneg %p177
      %p184 = scmp.eq.s32.totalorder %s16, 1
      %p185 = por %p183, %p184
      %p186 = scmp.ne.s32.totalorder %s178, %s181
      %p187 = scmp.eq.s32.totalorder %s16, 0
      %p188 = por %p186, %p187
      %p189 = scmp.ne.s32.totalorder %s178, %s181
      %p190 = scmp.eq.s32.totalorder %s21, 1
      %p191 = por %p189, %p190
      %p192 = scmp.ne.s32.totalorder %s181, %s182
      %p193 = scmp.eq.s32.totalorder %s21, 0
      %p194 = por %p192, %p193
      %p195 = scmp.ne.s32.totalorder %s181, %s182
      %p196 = scmp.eq.s32.totalorder %s22, 1
      %p197 = por %p195, %p196
      %p199 = scmp.ne.s32.totalorder %s182, %s198
      %p200 = scmp.eq.s32.totalorder %s22, 0
      %p201 = por %p199, %p200
      %p202 = scmp.le.s32.totalorder 1, %s16
      %p203 = scmp.lt.s32.totalorder %s16, 3
      %p204 = pnand %p202, %p203
      %p205 = pneg %p204
      // Predicated region
      $region9: #{ngram_lstm_forward.1} parent=5 // pred_check
        _
      $region10: #{ngram_lstm_forward.1} parent=5 // pred_check_branch
        %207 = sbr.rel (%p204) target = $region12
      $region11: #{ngram_lstm_forward.1} parent=5 // pred_region
        %s208 = ssub.s32 %s16, 1
        // Predicated region
        $region13: #{ngram_lstm_forward.1} parent=11 // pred_check
          %p209 = pneg %p63
        $region14: #{ngram_lstm_forward.1} parent=11 // pred_check_branch
          %211 = sbr.rel (%p209) target = $region16
        $region15: #{ngram_lstm_forward.1} parent=11 // pred_region
          _
        $region16: #{ngram_lstm_forward.1} parent=11 // pred_fallthru
          _
        // Predicated region
        $region17: #{ngram_lstm_forward.1} parent=11 // pred_check
          %p212 = pneg %p84
        $region18: #{ngram_lstm_forward.1} parent=11 // pred_check_branch
          %214 = sbr.rel (%p212) target = $region20
        $region19: #{ngram_lstm_forward.1} parent=11 // pred_region
          _
        $region20: #{ngram_lstm_forward.1} parent=11 // pred_fallthru
          _
        // Predicated region
        $region21: #{ngram_lstm_forward.1} parent=11 // pred_check
          %p215 = pneg %p105
        $region22: #{ngram_lstm_forward.1} parent=11 // pred_check_branch
          %217 = sbr.rel (%p215) target = $region24
        $region23: #{ngram_lstm_forward.1} parent=11 // pred_region
          _
        $region24: #{ngram_lstm_forward.1} parent=11 // pred_fallthru
          _
        // Predicated region
        $region25: #{ngram_lstm_forward.1} parent=11 // pred_check
          %p218 = pneg %p126
        $region26: #{ngram_lstm_forward.1} parent=11 // pred_check_branch
          %220 = sbr.rel (%p218) target = $region28
        $region27: #{ngram_lstm_forward.1} parent=11 // pred_region
          _
        $region28: #{ngram_lstm_forward.1} parent=11 // pred_fallthru
          _
        // Predicated region
        $region29: #{ngram_lstm_forward.1} parent=11 // pred_check
          %p221 = pneg %p147
        $region30: #{ngram_lstm_forward.1} parent=11 // pred_check_branch
          %223 = sbr.rel (%p221) target = $region32
        $region31: #{ngram_lstm_forward.1} parent=11 // pred_region
          _
        $region32: #{ngram_lstm_forward.1} parent=11 // pred_fallthru
          _
        // Predicated region
        $region33: #{ngram_lstm_forward.1} parent=11 // pred_check
          %p224 = pneg %p168
        $region34: #{ngram_lstm_forward.1} parent=11 // pred_check_branch
          %226 = sbr.rel (%p224) target = $region36
        $region35: #{ngram_lstm_forward.1} parent=11 // pred_region
          _
        $region36: #{ngram_lstm_forward.1} parent=11 // pred_fallthru
          _
      $region12: #{ngram_lstm_forward.1} parent=5 // pred_fallthru
        _
      %p227 = scmp.lt.s32.totalorder %s16, 2
      // Predicated region
      $region37: #{ngram_lstm_forward.1} parent=5 // pred_check
        %p228 = pneg %p227
      $region38: #{ngram_lstm_forward.1} parent=5 // pred_check_branch
        %230 = sbr.rel (%p228) target = $region40
      $region39: #{ngram_lstm_forward.1} parent=5 // pred_region
        // Predicated region
        $region41: #{ngram_lstm_forward.1} parent=39 // pred_check
          %p231 = pneg %p36
        $region42: #{ngram_lstm_forward.1} parent=39 // pred_check_branch
          %233 = sbr.rel (%p231) target = $region44
        $region43: #{ngram_lstm_forward.1} parent=39 // pred_region
          %p234 = scmp.lt.s32.totalorder %s16, 1
          %s235 = scalar_select %p234, %s16, 1
          %s236 = smul.addr %s235, 8
          %s237 = scalar_lea.vmem %s0, %s236
        $region44: #{ngram_lstm_forward.1} parent=39 // pred_fallthru
          _
      $region40: #{ngram_lstm_forward.1} parent=5 // pred_fallthru
        _
      %p238 = scmp.le.s32.totalorder 1, %s16
      %p239 = scmp.lt.s32.totalorder %s16, 3
      %p240 = pnand %p238, %p239
      %p241 = pneg %p240
      // Predicated region
      $region45: #{ngram_lstm_forward.1} parent=5 // pred_check
        _
      $region46: #{ngram_lstm_forward.1} parent=5 // pred_check_branch
        %243 = sbr.rel (%p240) target = $region48
      $region47: #{ngram_lstm_forward.1} parent=5 // pred_region
        %s244 = ssub.s32 %s16, 1
        %p245 = scmp.lt.s32.totalorder %s21, 1
        %s246 = scalar_select %p245, %s21, 1
        %s247 = smul.addr %s246, 8
        %s248 = scalar_lea.vmem %s0, %s247
        %p249 = pneg %p42
        %p250 = pneg %p39
        %p251 = pneg %p63
        %p252 = pneg %p60
        %p253 = pneg %p84
        %p254 = pneg %p81
        %p255 = pneg %p105
        %p256 = pneg %p102
        %p257 = pneg %p126
        %p258 = pneg %p123
        %p259 = pneg %p147
        %p260 = pneg %p144
        %p261 = pneg %p168
        %p262 = pneg %p165
        %p263 = pneg %p194
        %p264 = pneg %p191
        %s265 = sand.u32 %s181, 1
        %s266 = scalar_lea.sflag [#allocation3], %s265
        %s267 = sand.u32 %s181, 1
        %s268 = smul.addr %s267, 8
        %s269 = scalar_lea.vmem [#allocation2], %s268
        %p270 = scmp.lt.s32.totalorder %s21, 1
        %s271 = scalar_select %p270, %s21, 1
        %s272 = smul.addr %s271, 8
        %s273 = scalar_lea.vmem %s0, %s272
        %v274 = vld [vmem:[%s1] sm:$0xff]
        %v275 = vld [vmem:[%s5] sm:$0x1]
        %v277 = vlaneseq
        %v278 = vshrl.u32 %v277, 7
        %v279 = vsub.s32 0, %v278
        %v280 = vrot.slane %v275, %v279
        %v282 = vld [vmem:[%s6] sm:$0x1]
        %v284 = vlaneseq
        %v285 = vshrl.u32 %v284, 7
        %v286 = vsub.s32 0, %v285
        %v287 = vrot.slane %v282, %v286
        %v288 = vld [vmem:[%s273] sm:$0xff]
        %v289 = vld [vmem:[%s2] sm:$0xff]
        %v290 = vld [vmem:[%s2 + $0x8] sm:$0xff]
        %v291 = vld [vmem:[%s2 + $0x10] sm:$0xff]
        %v292 = vld [vmem:[%s2 + $0x18] sm:$0xff]
        %vm293 = vcmask 261120
        %v295 = vsel %vm293, %v288, 0
        %297 = vmatprep.subr.mxu0 0.0
        %298 = vmatpush1.msra.mxu0 %v289
        %299 = vmatprep.subr.mxu0 0.0
        %300 = vmatpush1.msra.mxu0 %v290
        %301 = vmatprep.subr.mxu0 0.0
        %302 = vmatpush1.msra.mxu0 %v291
        %303 = vmatprep.subr.mxu0 0.0
        %304 = vmatpush1.msra.mxu0 %v292
        %305 = vmatprep.subr.mxu0 0.0
        %306 = vmatpush1.msra.mxu0 0.0
        %307 = vmatprep.subr.mxu0 0.0
        %308 = vmatpush1.msra.mxu0 0.0
        %309 = vmatprep.subr.mxu0 0.0
        %310 = vmatpush1.msra.mxu0 0.0
        %311 = vmatprep.subr.mxu0 0.0
        %312 = vmatpush1.msra.mxu0 0.0
        %313 = vmatprep.subr.mxu0 0.0
        %314 = vmatpush1.msra.mxu0 0.0
        %315 = vmatprep.subr.mxu0 0.0
        %316 = vmatpush1.msra.mxu0 0.0
        %317 = vmatprep.subr.mxu0 0.0
        %318 = vmatpush1.msra.mxu0 0.0
        %319 = vmatprep.subr.mxu0 0.0
        %320 = vmatpush1.msra.mxu0 0.0
        %321 = vmatprep.subr.mxu0 0.0
        %322 = vmatpush1.msra.mxu0 0.0
        %323 = vmatprep.subr.mxu0 0.0
        %324 = vmatpush1.msra.mxu0 0.0
        %325 = vmatprep.subr.mxu0 0.0
        %326 = vmatpush1.msra.mxu0 0.0
        %327 = vmatprep.subr.mxu0 0.0
        %328 = vmatpush1.msra.mxu0 0.0
        %329 = vmatprep.subr.mxu0 0.0
        %330 = vmatpush1.msra.mxu0 0.0
        %331 = vmatprep.subr.mxu0 0.0
        %332 = vmatpush1.msra.mxu0 0.0
        %333 = vmatprep.subr.mxu0 0.0
        %334 = vmatpush1.msra.mxu0 0.0
        %335 = vmatprep.subr.mxu0 0.0
        %336 = vmatpush1.msra.mxu0 0.0
        %337 = vmatprep.subr.mxu0 0.0
        %338 = vmatpush1.msra.mxu0 0.0
        %339 = vmatprep.subr.mxu0 0.0
        %340 = vmatpush1.msra.mxu0 0.0
        %341 = vmatprep.subr.mxu0 0.0
        %342 = vmatpush1.msra.mxu0 0.0
        %343 = vmatprep.subr.mxu0 0.0
        %344 = vmatpush1.msra.mxu0 0.0
        %345 = vmatprep.subr.mxu0 0.0
        %346 = vmatpush1.msra.mxu0 0.0
        %347 = vmatprep.subr.mxu0 0.0
        %348 = vmatpush1.msra.mxu0 0.0
        %349 = vmatprep.subr.mxu0 0.0
        %350 = vmatpush1.msra.mxu0 0.0
        %351 = vmatprep.subr.mxu0 0.0
        %352 = vmatpush1.msra.mxu0 0.0
        %353 = vmatprep.subr.mxu0 0.0
        %354 = vmatpush1.msra.mxu0 0.0
        %355 = vmatprep.subr.mxu0 0.0
        %356 = vmatpush1.msra.mxu0 0.0
        %357 = vmatprep.subr.mxu0 0.0
        %358 = vmatpush1.msra.mxu0 0.0
        %359 = vmatprep.subr.mxu0 0.0
        %360 = vmatpush1.msra.mxu0 0.0
        %361 = vmatprep.mubr.f32.mxu0 0.0
        %362 = vmatmul.mubr.f32.gmra.mrb[0].mxu0 %v295
        %v363 = vpop.f32.mrb[0].mxu0
        %v364 = vadd.f32 0.0, %v363
        %v365 = vpop.f32.mrb[0].mxu0
        %366 = vdwg.mxu0
        %v367 = vadd.f32 %v364, %v280
        %368 = vrot.lane.b32.xlu0 %v287, 32
        %v369 = vpop.permute.xlu0 %368
        %v371 = vadd.f32 %v364, %v369
        %v372 = vld [vmem:[%s3] sm:$0xff]
        %v373 = vld [vmem:[%s3 + $0x8] sm:$0xff]
        %v374 = vld [vmem:[%s3 + $0x10] sm:$0xff]
        %v375 = vld [vmem:[%s3 + $0x18] sm:$0xff]
        %v376 = vld [vmem:[%s4] sm:$0xff]
        %v377 = vld [vmem:[%s4 + $0x8] sm:$0xff]
        %v378 = vld [vmem:[%s4 + $0x10] sm:$0xff]
        %v379 = vld [vmem:[%s4 + $0x18] sm:$0xff]
        %vm380 = vcmp.ge.s32.totalorder %v274, 2
        %v382 = vrot.slane %v367, 6
        %vm384 = vcmask 1041408
        %v385 = vsel %vm384, %v382, %v382
        %v386 = vsel %vm380, 1, 0
        %387 = vset.pattern.permute.xlu0 0
        %388 = vperm.xlu0 %387, %v386
        %v389 = vpop.permute.xlu0 %388
        %vm390 = vcmp.eq.s32.totalorder %v389, 1
        %v391 = vsel %vm390, %v385, %v280
        %v392 = vtanh.pop %v391
        %vm393 = vcmp.ge.s32.totalorder %v274, 1
        %v394 = vrot.slane %v367, 7
        %vm396 = vcmask 1040384
        %v397 = vsel %vm396, %v394, %v394
        %v398 = vsel %vm393, 1, 0
        %399 = vset.pattern.permute.xlu0 0
        %400 = vperm.xlu0 %399, %v398
        %v401 = vpop.permute.xlu0 %400
        %vm402 = vcmp.eq.s32.totalorder %v401, 1
        %v403 = vsel %vm402, %v397, %v280
        %v405 = vsel %vm293, %v392, 0
        %407 = vmatprep.subr.mxu0 0.0
        %408 = vmatpush1.msra.mxu0 %v372
        %409 = vmatprep.subr.mxu0 0.0
        %410 = vmatpush1.msra.mxu0 %v373
        %411 = vmatprep.subr.mxu0 0.0
        %412 = vmatpush1.msra.mxu0 %v374
        %413 = vmatprep.subr.mxu0 0.0
        %414 = vmatpush1.msra.mxu0 %v375
        %415 = vmatprep.subr.mxu0 0.0
        %416 = vmatpush1.msra.mxu0 0.0
        %417 = vmatprep.subr.mxu0 0.0
        %418 = vmatpush1.msra.mxu0 0.0
        %419 = vmatprep.subr.mxu0 0.0
        %420 = vmatpush1.msra.mxu0 0.0
        %421 = vmatprep.subr.mxu0 0.0
        %422 = vmatpush1.msra.mxu0 0.0
        %423 = vmatprep.subr.mxu0 0.0
        %424 = vmatpush1.msra.mxu0 0.0
        %425 = vmatprep.subr.mxu0 0.0
        %426 = vmatpush1.msra.mxu0 0.0
        %427 = vmatprep.subr.mxu0 0.0
        %428 = vmatpush1.msra.mxu0 0.0
        %429 = vmatprep.subr.mxu0 0.0
        %430 = vmatpush1.msra.mxu0 0.0
        %431 = vmatprep.subr.mxu0 0.0
        %432 = vmatpush1.msra.mxu0 0.0
        %433 = vmatprep.subr.mxu0 0.0
        %434 = vmatpush1.msra.mxu0 0.0
        %435 = vmatprep.subr.mxu0 0.0
        %436 = vmatpush1.msra.mxu0 0.0
        %437 = vmatprep.subr.mxu0 0.0
        %438 = vmatpush1.msra.mxu0 0.0
        %439 = vmatprep.subr.mxu0 0.0
        %440 = vmatpush1.msra.mxu0 0.0
        %441 = vmatprep.subr.mxu0 0.0
        %442 = vmatpush1.msra.mxu0 0.0
        %443 = vmatprep.subr.mxu0 0.0
        %444 = vmatpush1.msra.mxu0 0.0
        %445 = vmatprep.subr.mxu0 0.0
        %446 = vmatpush1.msra.mxu0 0.0
        %447 = vmatprep.subr.mxu0 0.0
        %448 = vmatpush1.msra.mxu0 0.0
        %449 = vmatprep.subr.mxu0 0.0
        %450 = vmatpush1.msra.mxu0 0.0
        %451 = vmatprep.subr.mxu0 0.0
        %452 = vmatpush1.msra.mxu0 0.0
        %453 = vmatprep.subr.mxu0 0.0
        %454 = vmatpush1.msra.mxu0 0.0
        %455 = vmatprep.subr.mxu0 0.0
        %456 = vmatpush1.msra.mxu0 0.0
        %457 = vmatprep.subr.mxu0 0.0
        %458 = vmatpush1.msra.mxu0 0.0
        %459 = vmatprep.subr.mxu0 0.0
        %460 = vmatpush1.msra.mxu0 0.0
        %461 = vmatprep.subr.mxu0 0.0
        %462 = vmatpush1.msra.mxu0 0.0
        %463 = vmatprep.subr.mxu0 0.0
        %464 = vmatpush1.msra.mxu0 0.0
        %465 = vmatprep.subr.mxu0 0.0
        %466 = vmatpush1.msra.mxu0 0.0
        %467 = vmatprep.subr.mxu0 0.0
        %468 = vmatpush1.msra.mxu0 0.0
        %469 = vmatprep.subr.mxu0 0.0
        %470 = vmatpush1.msra.mxu0 0.0
        %471 = vmatprep.mubr.f32.mxu0 0.0
        %472 = vmatmul.mubr.f32.gmra.mrb[0].mxu0 %v405
        %v473 = vpop.f32.mrb[0].mxu0
        %v474 = vadd.f32 0.0, %v473
        %v475 = vpop.f32.mrb[0].mxu0
        %476 = vdwg.mxu0
        %v477 = vadd.f32 %v403, %v474
        %v478 = vtanh.pop %v477
        %v480 = vsel %vm293, %v478, 0
        %482 = vmatprep.subr.mxu0 0.0
        %483 = vmatpush1.msra.mxu0 %v372
        %484 = vmatprep.subr.mxu0 0.0
        %485 = vmatpush1.msra.mxu0 %v373
        %486 = vmatprep.subr.mxu0 0.0
        %487 = vmatpush1.msra.mxu0 %v374
        %488 = vmatprep.subr.mxu0 0.0
        %489 = vmatpush1.msra.mxu0 %v375
        %490 = vmatprep.subr.mxu0 0.0
        %491 = vmatpush1.msra.mxu0 0.0
        %492 = vmatprep.subr.mxu0 0.0
        %493 = vmatpush1.msra.mxu0 0.0
        %494 = vmatprep.subr.mxu0 0.0
        %495 = vmatpush1.msra.mxu0 0.0
        %496 = vmatprep.subr.mxu0 0.0
        %497 = vmatpush1.msra.mxu0 0.0
        %498 = vmatprep.subr.mxu0 0.0
        %499 = vmatpush1.msra.mxu0 0.0
        %500 = vmatprep.subr.mxu0 0.0
        %501 = vmatpush1.msra.mxu0 0.0
        %502 = vmatprep.subr.mxu0 0.0
        %503 = vmatpush1.msra.mxu0 0.0
        %504 = vmatprep.subr.mxu0 0.0
        %505 = vmatpush1.msra.mxu0 0.0
        %506 = vmatprep.subr.mxu0 0.0
        %507 = vmatpush1.msra.mxu0 0.0
        %508 = vmatprep.subr.mxu0 0.0
        %509 = vmatpush1.msra.mxu0 0.0
        %510 = vmatprep.subr.mxu0 0.0
        %511 = vmatpush1.msra.mxu0 0.0
        %512 = vmatprep.subr.mxu0 0.0
        %513 = vmatpush1.msra.mxu0 0.0
        %514 = vmatprep.subr.mxu0 0.0
        %515 = vmatpush1.msra.mxu0 0.0
        %516 = vmatprep.subr.mxu0 0.0
        %517 = vmatpush1.msra.mxu0 0.0
        %518 = vmatprep.subr.mxu0 0.0
        %519 = vmatpush1.msra.mxu0 0.0
        %520 = vmatprep.subr.mxu0 0.0
        %521 = vmatpush1.msra.mxu0 0.0
        %522 = vmatprep.subr.mxu0 0.0
        %523 = vmatpush1.msra.mxu0 0.0
        %524 = vmatprep.subr.mxu0 0.0
        %525 = vmatpush1.msra.mxu0 0.0
        %526 = vmatprep.subr.mxu0 0.0
        %527 = vmatpush1.msra.mxu0 0.0
        %528 = vmatprep.subr.mxu0 0.0
        %529 = vmatpush1.msra.mxu0 0.0
        %530 = vmatprep.subr.mxu0 0.0
        %531 = vmatpush1.msra.mxu0 0.0
        %532 = vmatprep.subr.mxu0 0.0
        %533 = vmatpush1.msra.mxu0 0.0
        %534 = vmatprep.subr.mxu0 0.0
        %535 = vmatpush1.msra.mxu0 0.0
        %536 = vmatprep.subr.mxu0 0.0
        %537 = vmatpush1.msra.mxu0 0.0
        %538 = vmatprep.subr.mxu0 0.0
        %539 = vmatpush1.msra.mxu0 0.0
        %540 = vmatprep.subr.mxu0 0.0
        %541 = vmatpush1.msra.mxu0 0.0
        %542 = vmatprep.subr.mxu0 0.0
        %543 = vmatpush1.msra.mxu0 0.0
        %544 = vmatprep.subr.mxu0 0.0
        %545 = vmatpush1.msra.mxu0 0.0
        %546 = vmatprep.mubr.f32.mxu0 0.0
        %547 = vmatmul.mubr.f32.gmra.mrb[0].mxu0 %v480
        %v548 = vpop.f32.mrb[0].mxu0
        %v549 = vadd.f32 0.0, %v548
        %v550 = vpop.f32.mrb[0].mxu0
        %551 = vdwg.mxu0
        %v552 = vadd.f32 %v367, %v549
        %v553 = vtanh.pop %v552
        %v554 = vtanh.pop %v371
        %v556 = vrot.slane %v371, 7
        %v558 = vsel %vm396, %v556, %v556
        %v559 = vsel %vm402, %v558, %v369
        %561 = vrot.lane.b32.xlu0 %v554, 96
        %v562 = vpop.permute.xlu0 %561
        %v563 = vsel %vm293, %v562, 0
        %565 = vmatprep.subr.mxu0 0.0
        %566 = vmatpush1.msra.mxu0 %v376
        %567 = vmatprep.subr.mxu0 0.0
        %568 = vmatpush1.msra.mxu0 %v377
        %569 = vmatprep.subr.mxu0 0.0
        %570 = vmatpush1.msra.mxu0 %v378
        %571 = vmatprep.subr.mxu0 0.0
        %572 = vmatpush1.msra.mxu0 %v379
        %573 = vmatprep.subr.mxu0 0.0
        %574 = vmatpush1.msra.mxu0 0.0
        %575 = vmatprep.subr.mxu0 0.0
        %576 = vmatpush1.msra.mxu0 0.0
        %577 = vmatprep.subr.mxu0 0.0
        %578 = vmatpush1.msra.mxu0 0.0
        %579 = vmatprep.subr.mxu0 0.0
        %580 = vmatpush1.msra.mxu0 0.0
        %581 = vmatprep.subr.mxu0 0.0
        %582 = vmatpush1.msra.mxu0 0.0
        %583 = vmatprep.subr.mxu0 0.0
        %584 = vmatpush1.msra.mxu0 0.0
        %585 = vmatprep.subr.mxu0 0.0
        %586 = vmatpush1.msra.mxu0 0.0
        %587 = vmatprep.subr.mxu0 0.0
        %588 = vmatpush1.msra.mxu0 0.0
        %589 = vmatprep.subr.mxu0 0.0
        %590 = vmatpush1.msra.mxu0 0.0
        %591 = vmatprep.subr.mxu0 0.0
        %592 = vmatpush1.msra.mxu0 0.0
        %593 = vmatprep.subr.mxu0 0.0
        %594 = vmatpush1.msra.mxu0 0.0
        %595 = vmatprep.subr.mxu0 0.0
        %596 = vmatpush1.msra.mxu0 0.0
        %597 = vmatprep.subr.mxu0 0.0
        %598 = vmatpush1.msra.mxu0 0.0
        %599 = vmatprep.subr.mxu0 0.0
        %600 = vmatpush1.msra.mxu0 0.0
        %601 = vmatprep.subr.mxu0 0.0
        %602 = vmatpush1.msra.mxu0 0.0
        %603 = vmatprep.subr.mxu0 0.0
        %604 = vmatpush1.msra.mxu0 0.0
        %605 = vmatprep.subr.mxu0 0.0
        %606 = vmatpush1.msra.mxu0 0.0
        %607 = vmatprep.subr.mxu0 0.0
        %608 = vmatpush1.msra.mxu0 0.0
        %609 = vmatprep.subr.mxu0 0.0
        %610 = vmatpush1.msra.mxu0 0.0
        %611 = vmatprep.subr.mxu0 0.0
        %612 = vmatpush1.msra.mxu0 0.0
        %613 = vmatprep.subr.mxu0 0.0
        %614 = vmatpush1.msra.mxu0 0.0
        %615 = vmatprep.subr.mxu0 0.0
        %616 = vmatpush1.msra.mxu0 0.0
        %617 = vmatprep.subr.mxu0 0.0
        %618 = vmatpush1.msra.mxu0 0.0
        %619 = vmatprep.subr.mxu0 0.0
        %620 = vmatpush1.msra.mxu0 0.0
        %621 = vmatprep.subr.mxu0 0.0
        %622 = vmatpush1.msra.mxu0 0.0
        %623 = vmatprep.subr.mxu0 0.0
        %624 = vmatpush1.msra.mxu0 0.0
        %625 = vmatprep.subr.mxu0 0.0
        %626 = vmatpush1.msra.mxu0 0.0
        %627 = vmatprep.subr.mxu0 0.0
        %628 = vmatpush1.msra.mxu0 0.0
        %629 = vmatprep.mubr.f32.mxu0 0.0
        %630 = vmatmul.mubr.f32.gmra.mrb[0].mxu0 %v563
        %v631 = vpop.f32.mrb[0].mxu0
        %v632 = vadd.f32 0.0, %v631
        %v633 = vpop.f32.mrb[0].mxu0
        %634 = vdwg.mxu0
        %636 = vrot.lane.b32.xlu0 %v632, 32
        %v637 = vpop.permute.xlu0 %636
        %v639 = vadd.f32 %v559, %v637
        %v640 = vtanh.pop %v639
        %v641 = vrot.slane %v371, 6
        %v643 = vsel %vm384, %v641, %v641
        %v644 = vsel %vm390, %v643, %v369
        %646 = vrot.lane.b32.xlu0 %v640, 96
        %v647 = vpop.permute.xlu0 %646
        %v648 = vsel %vm293, %v647, 0
        %650 = vmatprep.subr.mxu0 0.0
        %651 = vmatpush1.msra.mxu0 %v376
        %652 = vmatprep.subr.mxu0 0.0
        %653 = vmatpush1.msra.mxu0 %v377
        %654 = vmatprep.subr.mxu0 0.0
        %655 = vmatpush1.msra.mxu0 %v378
        %656 = vmatprep.subr.mxu0 0.0
        %657 = vmatpush1.msra.mxu0 %v379
        %658 = vmatprep.subr.mxu0 0.0
        %659 = vmatpush1.msra.mxu0 0.0
        %660 = vmatprep.subr.mxu0 0.0
        %661 = vmatpush1.msra.mxu0 0.0
        %662 = vmatprep.subr.mxu0 0.0
        %663 = vmatpush1.msra.mxu0 0.0
        %664 = vmatprep.subr.mxu0 0.0
        %665 = vmatpush1.msra.mxu0 0.0
        %666 = vmatprep.subr.mxu0 0.0
        %667 = vmatpush1.msra.mxu0 0.0
        %668 = vmatprep.subr.mxu0 0.0
        %669 = vmatpush1.msra.mxu0 0.0
        %670 = vmatprep.subr.mxu0 0.0
        %671 = vmatpush1.msra.mxu0 0.0
        %672 = vmatprep.subr.mxu0 0.0
        %673 = vmatpush1.msra.mxu0 0.0
        %674 = vmatprep.subr.mxu0 0.0
        %675 = vmatpush1.msra.mxu0 0.0
        %676 = vmatprep.subr.mxu0 0.0
        %677 = vmatpush1.msra.mxu0 0.0
        %678 = vmatprep.subr.mxu0 0.0
        %679 = vmatpush1.msra.mxu0 0.0
        %680 = vmatprep.subr.mxu0 0.0
        %681 = vmatpush1.msra.mxu0 0.0
        %682 = vmatprep.subr.mxu0 0.0
        %683 = vmatpush1.msra.mxu0 0.0
        %684 = vmatprep.subr.mxu0 0.0
        %685 = vmatpush1.msra.mxu0 0.0
        %686 = vmatprep.subr.mxu0 0.0
        %687 = vmatpush1.msra.mxu0 0.0
        %688 = vmatprep.subr.mxu0 0.0
        %689 = vmatpush1.msra.mxu0 0.0
        %690 = vmatprep.subr.mxu0 0.0
        %691 = vmatpush1.msra.mxu0 0.0
        %692 = vmatprep.subr.mxu0 0.0
        %693 = vmatpush1.msra.mxu0 0.0
        %694 = vmatprep.subr.mxu0 0.0
        %695 = vmatpush1.msra.mxu0 0.0
        %696 = vmatprep.subr.mxu0 0.0
        %697 = vmatpush1.msra.mxu0 0.0
        %698 = vmatprep.subr.mxu0 0.0
        %699 = vmatpush1.msra.mxu0 0.0
        %700 = vmatprep.subr.mxu0 0.0
        %701 = vmatpush1.msra.mxu0 0.0
        %702 = vmatprep.subr.mxu0 0.0
        %703 = vmatpush1.msra.mxu0 0.0
        %704 = vmatprep.subr.mxu0 0.0
        %705 = vmatpush1.msra.mxu0 0.0
        %706 = vmatprep.subr.mxu0 0.0
        %707 = vmatpush1.msra.mxu0 0.0
        %708 = vmatprep.subr.mxu0 0.0
        %709 = vmatpush1.msra.mxu0 0.0
        %710 = vmatprep.subr.mxu0 0.0
        %711 = vmatpush1.msra.mxu0 0.0
        %712 = vmatprep.subr.mxu0 0.0
        %713 = vmatpush1.msra.mxu0 0.0
        %714 = vmatprep.mubr.f32.mxu0 0.0
        %715 = vmatmul.mubr.f32.gmra.mrb[0].mxu0 %v648
        %v716 = vpop.f32.mrb[0].mxu0
        %v717 = vadd.f32 0.0, %v716
        %v718 = vpop.f32.mrb[0].mxu0
        %719 = vdwg.mxu0
        %721 = vrot.lane.b32.xlu0 %v717, 32
        %v722 = vpop.permute.xlu0 %721
        %v724 = vadd.f32 %v644, %v722
        %v725 = vtanh.pop %v724
        %727 = vrot.lane.b32.xlu0 %v725, 96
        %v728 = vpop.permute.xlu0 %727
        %v730 = vadd.f32 %v553, %v728
        %731 = vst.msk [vmem:[%s269] sm:$0xff] %vm293, %v730
        %s732 = sand.u32 %s181, 1
        %s733 = scalar_lea.sflag [#allocation3], %s732
        %s734 = sand.u32 %s181, 1
        %s735 = smul.addr %s734, 8
        %s736 = scalar_lea.vmem [#allocation2], %s735
        // Predicated region
        $region49: #{ngram_lstm_forward.1} parent=47 // pred_check
          %p737 = pneg %p191
        $region50: #{ngram_lstm_forward.1} parent=47 // pred_check_branch
          %739 = sbr.rel (%p737) target = $region52
        $region51: #{ngram_lstm_forward.1} parent=47 // pred_region
          %s741 = ssub.s32 128, 128
          %742 = vsyncadd %s733, %s741
          %s743 = smul.addr %s21, 128
          %s744 = scalar_lea.hbm %s7, %s743
          %s746 = sshll.u32 %s736, 4
          %s747 = int_to_ptr.vmem [resolvable:$true] %s746
          %749 = dma.vmem_to_hbm [thread:$0]  %s747, 128, %s744, %s733
        $region52: #{ngram_lstm_forward.1} parent=47 // pred_fallthru
          _
      $region48: #{ngram_lstm_forward.1} parent=5 // pred_fallthru
        _
      %p750 = scmp.le.s32.totalorder 2, %s16
      // Predicated region
      $region53: #{ngram_lstm_forward.1} parent=5 // pred_check
        %p751 = pneg %p750
      $region54: #{ngram_lstm_forward.1} parent=5 // pred_check_branch
        %753 = sbr.rel (%p751) target = $region56
      $region55: #{ngram_lstm_forward.1} parent=5 // pred_region
        %s754 = ssub.s32 %s16, 2
        // Predicated region
        $region57: #{ngram_lstm_forward.1} parent=55 // pred_check
          %p755 = pneg %p197
        $region58: #{ngram_lstm_forward.1} parent=55 // pred_check_branch
          %757 = sbr.rel (%p755) target = $region60
        $region59: #{ngram_lstm_forward.1} parent=55 // pred_region
          %s758 = sand.u32 %s182, 1
          %s759 = scalar_lea.sflag [#allocation3], %s758
          %s760 = sand.u32 %s182, 1
          %s761 = smul.addr %s760, 8
          %s762 = scalar_lea.vmem [#allocation2], %s761
          %763 = dma.done %s759, 128
        $region60: #{ngram_lstm_forward.1} parent=55 // pred_fallthru
          _
      $region56: #{ngram_lstm_forward.1} parent=5 // pred_fallthru
        _
    $region6: #{ngram_lstm_forward.1} parent=1 // loop_footer
      %s20 = sadd.s32 1, %s16
    $region7: #{ngram_lstm_forward.1} parent=1 // loop_footer_branch
      %15 = sbr.rel target = $region3
    $region8: #{ngram_lstm_forward.1} parent=1 // loop_exit
      _
    %764 = vsyncpa [#allocation3], 1
    %s765 = scalar_lea.sflag [#allocation3], 1
    %766 = vsyncpa %s765, 1

</llo_original>
